<compile_context>
chip_gen: v5e
topology: v5e:2x2
jax: 0.10.0
libtpu: 0.0.40
codegen_flags: <defaults>
</compile_context>

<pallas_src>
import math

import jax
import jax.numpy as jnp
from jax import lax
from jax.experimental import pallas as pl
from jax.experimental.pallas import tpu as pltpu

LANE = 128
SUBLANE = 8
TILE_ROWS = 1024                     # rows of 128 lanes per grid step
INV_LN2 = 1.0 / math.log(2.0)        # log2(x) = log(x) * INV_LN2


# ---------------- wrapper-side data prep (no full-copy in the aligned case) --

def _prep(x):
    """Flatten to a lane-dense (rows, 128) slab in native dtype.

    Pads (which costs a copy) only when the element count is not already a
    multiple of 8*128.  Pad value is irrelevant (masked in-kernel); 1.0 keeps
    log() finite for likelihood slabs.  Returns (slab, n_valid_elements).
    """
    flat = x.reshape(-1)
    n = int(flat.shape[0])
    chunk = SUBLANE * LANE
    padded = -(-n // chunk) * chunk
    if padded != n:
        flat = jnp.concatenate(
            [flat, jnp.full((padded - n,), 1.0, flat.dtype)])
    return flat.reshape(padded // LANE, LANE), n


def _tiling(rows):
    """Per-tensor tile rows / block count (rows is always a multiple of 8)."""
    tile = min(TILE_ROWS, rows)
    nblocks = -(-rows // tile)
    return tile, nblocks


def _clamped_index_map(nblocks):
    # Tensors with fewer blocks than the grid stay pinned on their last block
    # (no re-DMA since the block index stops changing); kernel masks them out.
    def index_map(i):
        return (jnp.minimum(i, nblocks - 1), 0)
    return index_map


def _out_index_map(i):
    return (0, 0)


# ---------------- fused Pallas kernel ----------------------------------------

def _build_loss_kernel(img_meta, ll_metas):
    """img_meta / ll_metas[k] = (n_valid_elements, tile_rows, n_blocks)."""
    n_ll = len(ll_metas)

    def kernel(*refs):
        img_ref, xhat_ref = refs[0], refs[1]
        ll_refs = refs[2:2 + n_ll]
        sse_out = refs[2 + n_ll]
        bpp_outs = refs[3 + n_ll:3 + 2 * n_ll]
        sse_acc = refs[3 + 2 * n_ll]
        ll_accs = refs[4 + 2 * n_ll:]

        i = pl.program_id(0)
        last = pl.num_programs(0) - 1

        @pl.when(i == 0)
        def _init():
            sse_acc[...] = jnp.zeros_like(sse_acc)
            for a in ll_accs:
                a[...] = jnp.zeros_like(a)

        def valid_mask(meta):
            n_valid, tile, nblocks = meta
            blk = jnp.minimum(i, nblocks - 1)       # matches clamped index_map
            base = blk * (tile * LANE)
            row = lax.broadcasted_iota(jnp.int32, (tile, LANE), 0)
            col = lax.broadcasted_iota(jnp.int32, (tile, LANE), 1)
            eid = base + row * LANE + col
            return (eid < n_valid) & (i < nblocks)

        def fold(acc_ref, vals, tile):
            # Pure-VALU accumulation into a vreg-shaped (8,128) accumulator.
            # The reshape is (8,128)-tile aligned, so no cross-lane movement.
            acc_ref[...] += vals.reshape(
                tile // SUBLANE, SUBLANE, LANE).sum(axis=0)

        # --- sum((x_hat - img)^2) -------------------------------------------
        m = valid_mask(img_meta)
        d = xhat_ref[...].astype(jnp.float32) - img_ref[...].astype(jnp.float32)
        fold(sse_acc, jnp.where(m, d * d, 0.0), img_meta[1])

        # --- per-likelihood  -sum(log2(l)) -----------------------------------
        for ll_ref, acc, meta in zip(ll_refs, ll_accs, ll_metas):
            mk = valid_mask(meta)
            nll = -jnp.log(ll_ref[...].astype(jnp.float32)) * INV_LN2
            fold(acc, jnp.where(mk, nll, 0.0), meta[1])

        # --- epilogue: single cross-lane reduce + single (1,1) store each ----
        @pl.when(i == last)
        def _finalize():
            sse_out[...] = jnp.sum(sse_acc[...]).reshape(1, 1)
            for o, a in zip(bpp_outs, ll_accs):
                o[...] = jnp.sum(a[...]).reshape(1, 1)

    return kernel


def _fused_reductions(img2d, xhat2d, ll2ds, img_meta, ll_metas):
    n_ll = len(ll_metas)
    n_out = 1 + n_ll

    grid = (max([img_meta[2]] + [m[2] for m in ll_metas]),)

    in_specs = [
        pl.BlockSpec((img_meta[1], LANE), _clamped_index_map(img_meta[2])),
        pl.BlockSpec((img_meta[1], LANE), _clamped_index_map(img_meta[2])),
    ]
    in_specs += [pl.BlockSpec((m[1], LANE), _clamped_index_map(m[2]))
                 for m in ll_metas]

    out_specs = [pl.BlockSpec((1, 1), _out_index_map) for _ in range(n_out)]
    out_shape = tuple(jax.ShapeDtypeStruct((1, 1), jnp.float32)
                      for _ in range(n_out))
    scratch = [pltpu.VMEM((SUBLANE, LANE), jnp.float32) for _ in range(n_out)]

    kernel = _build_loss_kernel(img_meta, ll_metas)

    return pl.pallas_call(
        kernel,
        out_shape=out_shape,
        grid_spec=pltpu.PrefetchScalarGridSpec(
            num_scalar_prefetch=0,
            grid=grid,
            in_specs=in_specs,
            out_specs=out_specs,
            scratch_shapes=scratch,
        ),
        compiler_params=pltpu.CompilerParams(
            dimension_semantics=("arbitrary",)),   # reduction axis (resident outs)
    )(img2d, xhat2d, *ll2ds)


# ---------------- RateDistortionLoss.forward ----------------------------------

def rate_distortion_loss(img, x_hat, likelihoods, aux_loss, lbd):
    """Mirrors RateDistortionLoss.forward given the wrapped net's outputs."""
    N, _, H, W = img.shape
    n_batch_pixel = N * H * W
    keys = list(likelihoods.keys())

    img2d, n_img = _prep(img)
    xhat2d, n_xh = _prep(x_hat)
    assert n_img == n_xh

    tile_i, nb_i = _tiling(img2d.shape[0])
    img_meta = (n_img, tile_i, nb_i)

    ll2ds, ll_metas = [], []
    for k in keys:
        slab, n_k = _prep(likelihoods[k])
        t_k, nb_k = _tiling(slab.shape[0])
        ll2ds.append(slab)
        ll_metas.append((n_k, t_k, nb_k))

    outs = _fused_reductions(img2d, xhat2d, ll2ds, img_meta, ll_metas)

    loss = {}
    # nn.MSELoss() = mean over all elements of (x_hat - img)^2
    loss['mse'] = outs[0][0, 0] / jnp.float32(img.size)

    bpp = jnp.float32(0.0)
    for k, o in zip(keys, outs[1:]):
        bpp_k = o[0, 0] / jnp.float32(n_batch_pixel)
        loss[f'bpp.{k}'] = bpp_k
        bpp = bpp + bpp_k
    loss['bpp'] = bpp

    loss['loss'] = loss['bpp'] + jnp.float32(lbd) * (255.0 ** 2) * loss['mse']
    loss['aux_loss'] = aux_loss
    return loss


if __name__ == "__main__":
    key = jax.random.PRNGKey(0)
    k_img, k_noise, k_y, k_z = jax.random.split(key, 4)

    # Small shapes consistent with an image-compression net forward.
    N, C, H, W = 2, 4, 16, 16
    img = jax.random.uniform(k_img, (N, C, H, W), jnp.float32)

    # TODO(synk): synthetic deterministic "net" outputs / aux_loss stand-ins.
    x_hat = jnp.clip(img + 0.01 * jax.random.normal(k_noise, img.shape,
                                                    jnp.float32), 0.0, 1.0)
    likelihoods = {
        'y': jax.random.uniform(k_y, (N, 8, H // 4, W // 4), jnp.float32,
                                minval=1e-3, maxval=1.0),
        'z': jax.random.uniform(k_z, (N, 8, H // 8, W // 8), jnp.float32,
                                minval=1e-3, maxval=1.0),
    }
    aux_loss = jnp.float32(0.123)
    lbd = 0.01

    loss = rate_distortion_loss(img, x_hat, likelihoods, aux_loss, lbd)
    jax.block_until_ready(loss['loss'])

    # light sanity check against plain-JAX reference
    ref_mse = jnp.mean((x_hat - img) ** 2)
    ref_bpp = sum(-jnp.sum(jnp.log(ll)) / math.log(2.0)
                  for ll in likelihoods.values()) / (N * H * W)
    ref_loss = ref_bpp + lbd * 255.0 ** 2 * ref_mse
    assert jnp.allclose(loss['mse'], ref_mse, rtol=1e-5, atol=1e-6)
    assert jnp.allclose(loss['bpp'], ref_bpp, rtol=1e-5, atol=1e-5)
    assert jnp.allclose(loss['loss'], ref_loss, rtol=1e-5, atol=1e-5)

    print("KERNEL_OK")
</pallas_src>

<mosaic_0001>
module attributes {stable_mosaic.version = 11 : i64} {
  func.func @kernel(%arg0: i32, %arg1: memref<16x128xf32, #tpu.memory_space<vmem>>, %arg2: memref<16x128xf32, #tpu.memory_space<vmem>>, %arg3: memref<8x128xf32, #tpu.memory_space<vmem>>, %arg4: memref<8x128xf32, #tpu.memory_space<vmem>>, %arg5: memref<1x1xf32, #tpu.memory_space<vmem>>, %arg6: memref<1x1xf32, #tpu.memory_space<vmem>>, %arg7: memref<1x1xf32, #tpu.memory_space<vmem>>, %arg8: memref<8x128xf32, #tpu.memory_space<vmem>>, %arg9: memref<8x128xf32, #tpu.memory_space<vmem>>, %arg10: memref<8x128xf32, #tpu.memory_space<vmem>>) attributes {dimension_semantics = [#tpu.dimension_semantics<arbitrary>], iteration_bounds = array<i64: 1>, scalar_prefetch = 0 : i64, scratch_operands = 3 : i64, tpu.core_type = #tpu.core_type<tc>, window_params = [{transform_indices = @transform_0, window_bounds = array<i64: 16, 128>}, {transform_indices = @transform_1, window_bounds = array<i64: 16, 128>}, {transform_indices = @transform_2, window_bounds = array<i64: 8, 128>}, {transform_indices = @transform_3, window_bounds = array<i64: 8, 128>}, {pipeline_mode = #tpu.pipeline_mode<synchronous>, transform_indices = @transform_4, window_bounds = array<i64: 1, 1>}, {pipeline_mode = #tpu.pipeline_mode<synchronous>, transform_indices = @transform_5, window_bounds = array<i64: 1, 1>}, {pipeline_mode = #tpu.pipeline_mode<synchronous>, transform_indices = @transform_6, window_bounds = array<i64: 1, 1>}]} {
    %c0_i32 = arith.constant 0 : i32
    %0 = arith.cmpi eq, %arg0, %c0_i32 : i32
    %1 = arith.extui %0 : i1 to i32
    %c0_i32_0 = arith.constant 0 : i32
    %2 = arith.cmpi ne, %1, %c0_i32_0 : i32
    scf.if %2 {
      %cst_40 = arith.constant 0.000000e+00 : f32
      %85 = vector.broadcast %cst_40 : f32 to vector<8x128xf32>
      %c0_41 = arith.constant 0 : index
      %c0_42 = arith.constant 0 : index
      %86 = vector.load %arg8[%c0_41, %c0_42] : memref<8x128xf32, #tpu.memory_space<vmem>>, vector<8x128xf32>
      tpu.vector_store %arg8[%c0_41, %c0_42], %85 {strides = array<i32>} : memref<8x128xf32, #tpu.memory_space<vmem>>, vector<8x128xf32>,
      %cst_43 = arith.constant 0.000000e+00 : f32
      %87 = vector.broadcast %cst_43 : f32 to vector<8x128xf32>
      %c0_44 = arith.constant 0 : index
      %c0_45 = arith.constant 0 : index
      %88 = vector.load %arg9[%c0_44, %c0_45] : memref<8x128xf32, #tpu.memory_space<vmem>>, vector<8x128xf32>
      tpu.vector_store %arg9[%c0_44, %c0_45], %87 {strides = array<i32>} : memref<8x128xf32, #tpu.memory_space<vmem>>, vector<8x128xf32>,
      %cst_46 = arith.constant 0.000000e+00 : f32
      %89 = vector.broadcast %cst_46 : f32 to vector<8x128xf32>
      %c0_47 = arith.constant 0 : index
      %c0_48 = arith.constant 0 : index
      %90 = vector.load %arg10[%c0_47, %c0_48] : memref<8x128xf32, #tpu.memory_space<vmem>>, vector<8x128xf32>
      tpu.vector_store %arg10[%c0_47, %c0_48], %89 {strides = array<i32>} : memref<8x128xf32, #tpu.memory_space<vmem>>, vector<8x128xf32>,
    } else {
    }
    %c0_i32_1 = arith.constant 0 : i32
    %3 = arith.minsi %arg0, %c0_i32_1 : i32
    %c2048_i32 = arith.constant 2048 : i32
    %4 = arith.muli %3, %c2048_i32 : i32
    %5 = tpu.iota {dimensions = array<i32: 0>} : vector<16x128xi32>
    %6 = tpu.iota {dimensions = array<i32: 1>} : vector<16x128xi32>
    %c128_i32 = arith.constant 128 : i32
    %7 = vector.broadcast %c128_i32 : i32 to vector<16x128xi32>
    %8 = arith.muli %5, %7 : vector<16x128xi32>
    %9 = vector.broadcast %4 : i32 to vector<16x128xi32>
    %10 = arith.addi %9, %8 : vector<16x128xi32>
    %11 = arith.addi %10, %6 : vector<16x128xi32>
    %c2048_i32_2 = arith.constant 2048 : i32
    %12 = vector.broadcast %c2048_i32_2 : i32 to vector<16x128xi32>
    %13 = arith.cmpi slt, %11, %12 : vector<16x128xi32>
    %c1_i32 = arith.constant 1 : i32
    %14 = arith.cmpi slt, %arg0, %c1_i32 : i32
    %15 = vector.broadcast %14 : i1 to vector<16x128xi1>
    %16 = arith.andi %13, %15 : vector<16x128xi1>
    %c0 = arith.constant 0 : index
    %c0_3 = arith.constant 0 : index
    %17 = vector.load %arg2[%c0, %c0_3] : memref<16x128xf32, #tpu.memory_space<vmem>>, vector<16x128xf32>
    %c0_4 = arith.constant 0 : index
    %c0_5 = arith.constant 0 : index
    %18 = vector.load %arg1[%c0_4, %c0_5] : memref<16x128xf32, #tpu.memory_space<vmem>>, vector<16x128xf32>
    %19 = arith.subf %17, %18 : vector<16x128xf32>
    %20 = arith.mulf %19, %19 : vector<16x128xf32>
    %cst = arith.constant 0.000000e+00 : f32
    %21 = vector.broadcast %cst : f32 to vector<16x128xf32>
    %22 = arith.select %16, %20, %21 : vector<16x128xi1>, vector<16x128xf32>
    %c0_6 = arith.constant 0 : index
    %c0_7 = arith.constant 0 : index
    %23 = vector.load %arg8[%c0_6, %c0_7] : memref<8x128xf32, #tpu.memory_space<vmem>>, vector<8x128xf32>
    %24 = vector.shape_cast %22 : vector<16x128xf32> to vector<2x8x128xf32>
    %cst_8 = arith.constant dense<0.000000e+00> : vector<8x128xf32>
    %25 = vector.multi_reduction <add>, %24, %cst_8 [0] : vector<2x8x128xf32> to vector<8x128xf32>
    %26 = arith.addf %23, %25 : vector<8x128xf32>
    %c0_9 = arith.constant 0 : index
    %c0_10 = arith.constant 0 : index
    %27 = vector.load %arg8[%c0_9, %c0_10] : memref<8x128xf32, #tpu.memory_space<vmem>>, vector<8x128xf32>
    tpu.vector_store %arg8[%c0_9, %c0_10], %26 {strides = array<i32>} : memref<8x128xf32, #tpu.memory_space<vmem>>, vector<8x128xf32>,
    %c0_i32_11 = arith.constant 0 : i32
    %28 = arith.minsi %arg0, %c0_i32_11 : i32
    %c1024_i32 = arith.constant 1024 : i32
    %29 = arith.muli %28, %c1024_i32 : i32
    %30 = tpu.iota {dimensions = array<i32: 0>} : vector<8x128xi32>
    %31 = tpu.iota {dimensions = array<i32: 1>} : vector<8x128xi32>
    %c128_i32_12 = arith.constant 128 : i32
    %32 = vector.broadcast %c128_i32_12 : i32 to vector<8x128xi32>
    %33 = arith.muli %30, %32 : vector<8x128xi32>
    %34 = vector.broadcast %29 : i32 to vector<8x128xi32>
    %35 = arith.addi %34, %33 : vector<8x128xi32>
    %36 = arith.addi %35, %31 : vector<8x128xi32>
    %c256_i32 = arith.constant 256 : i32
    %37 = vector.broadcast %c256_i32 : i32 to vector<8x128xi32>
    %38 = arith.cmpi slt, %36, %37 : vector<8x128xi32>
    %c1_i32_13 = arith.constant 1 : i32
    %39 = arith.cmpi slt, %arg0, %c1_i32_13 : i32
    %40 = vector.broadcast %39 : i1 to vector<8x128xi1>
    %41 = arith.andi %38, %40 : vector<8x128xi1>
    %c0_14 = arith.constant 0 : index
    %c0_15 = arith.constant 0 : index
    %42 = vector.load %arg3[%c0_14, %c0_15] : memref<8x128xf32, #tpu.memory_space<vmem>>, vector<8x128xf32>
    %43 = math.log %42 : vector<8x128xf32>
    %cst_16 = arith.constant 0.000000e+00 : f32
    %44 = vector.broadcast %cst_16 : f32 to vector<8x128xf32>
    %45 = arith.subf %44, %43 : vector<8x128xf32>
    %cst_17 = arith.constant 1.44269502 : f32
    %46 = vector.broadcast %cst_17 : f32 to vector<8x128xf32>
    %47 = arith.mulf %45, %46 : vector<8x128xf32>
    %cst_18 = arith.constant 0.000000e+00 : f32
    %48 = vector.broadcast %cst_18 : f32 to vector<8x128xf32>
    %49 = arith.select %41, %47, %48 : vector<8x128xi1>, vector<8x128xf32>
    %c0_19 = arith.constant 0 : index
    %c0_20 = arith.constant 0 : index
    %50 = vector.load %arg9[%c0_19, %c0_20] : memref<8x128xf32, #tpu.memory_space<vmem>>, vector<8x128xf32>
    %51 = vector.shape_cast %49 : vector<8x128xf32> to vector<1x8x128xf32>
    %cst_21 = arith.constant dense<0.000000e+00> : vector<8x128xf32>
    %52 = vector.multi_reduction <add>, %51, %cst_21 [0] : vector<1x8x128xf32> to vector<8x128xf32>
    %53 = arith.addf %50, %52 : vector<8x128xf32>
    %c0_22 = arith.constant 0 : index
    %c0_23 = arith.constant 0 : index
    %54 = vector.load %arg9[%c0_22, %c0_23] : memref<8x128xf32, #tpu.memory_space<vmem>>, vector<8x128xf32>
    tpu.vector_store %arg9[%c0_22, %c0_23], %53 {strides = array<i32>} : memref<8x128xf32, #tpu.memory_space<vmem>>, vector<8x128xf32>,
    %c0_i32_24 = arith.constant 0 : i32
    %55 = arith.minsi %arg0, %c0_i32_24 : i32
    %c1024_i32_25 = arith.constant 1024 : i32
    %56 = arith.muli %55, %c1024_i32_25 : i32
    %57 = tpu.iota {dimensions = array<i32: 0>} : vector<8x128xi32>
    %58 = tpu.iota {dimensions = array<i32: 1>} : vector<8x128xi32>
    %c128_i32_26 = arith.constant 128 : i32
    %59 = vector.broadcast %c128_i32_26 : i32 to vector<8x128xi32>
    %60 = arith.muli %57, %59 : vector<8x128xi32>
    %61 = vector.broadcast %56 : i32 to vector<8x128xi32>
    %62 = arith.addi %61, %60 : vector<8x128xi32>
    %63 = arith.addi %62, %58 : vector<8x128xi32>
    %c64_i32 = arith.constant 64 : i32
    %64 = vector.broadcast %c64_i32 : i32 to vector<8x128xi32>
    %65 = arith.cmpi slt, %63, %64 : vector<8x128xi32>
    %c1_i32_27 = arith.constant 1 : i32
    %66 = arith.cmpi slt, %arg0, %c1_i32_27 : i32
    %67 = vector.broadcast %66 : i1 to vector<8x128xi1>
    %68 = arith.andi %65, %67 : vector<8x128xi1>
    %c0_28 = arith.constant 0 : index
    %c0_29 = arith.constant 0 : index
    %69 = vector.load %arg4[%c0_28, %c0_29] : memref<8x128xf32, #tpu.memory_space<vmem>>, vector<8x128xf32>
    %70 = math.log %69 : vector<8x128xf32>
    %cst_30 = arith.constant 0.000000e+00 : f32
    %71 = vector.broadcast %cst_30 : f32 to vector<8x128xf32>
    %72 = arith.subf %71, %70 : vector<8x128xf32>
    %cst_31 = arith.constant 1.44269502 : f32
    %73 = vector.broadcast %cst_31 : f32 to vector<8x128xf32>
    %74 = arith.mulf %72, %73 : vector<8x128xf32>
    %cst_32 = arith.constant 0.000000e+00 : f32
    %75 = vector.broadcast %cst_32 : f32 to vector<8x128xf32>
    %76 = arith.select %68, %74, %75 : vector<8x128xi1>, vector<8x128xf32>
    %c0_33 = arith.constant 0 : index
    %c0_34 = arith.constant 0 : index
    %77 = vector.load %arg10[%c0_33, %c0_34] : memref<8x128xf32, #tpu.memory_space<vmem>>, vector<8x128xf32>
    %78 = vector.shape_cast %76 : vector<8x128xf32> to vector<1x8x128xf32>
    %cst_35 = arith.constant dense<0.000000e+00> : vector<8x128xf32>
    %79 = vector.multi_reduction <add>, %78, %cst_35 [0] : vector<1x8x128xf32> to vector<8x128xf32>
    %80 = arith.addf %77, %79 : vector<8x128xf32>
    %c0_36 = arith.constant 0 : index
    %c0_37 = arith.constant 0 : index
    %81 = vector.load %arg10[%c0_36, %c0_37] : memref<8x128xf32, #tpu.memory_space<vmem>>, vector<8x128xf32>
    tpu.vector_store %arg10[%c0_36, %c0_37], %80 {strides = array<i32>} : memref<8x128xf32, #tpu.memory_space<vmem>>, vector<8x128xf32>,
    %c0_i32_38 = arith.constant 0 : i32
    %82 = arith.cmpi eq, %arg0, %c0_i32_38 : i32
    %83 = arith.extui %82 : i1 to i32
    %c0_i32_39 = arith.constant 0 : i32
    %84 = arith.cmpi ne, %83, %c0_i32_39 : i32
    scf.if %84 {
      %c0_40 = arith.constant 0 : index
      %c0_41 = arith.constant 0 : index
      %85 = vector.load %arg8[%c0_40, %c0_41] : memref<8x128xf32, #tpu.memory_space<vmem>>, vector<8x128xf32>
      %86 = vector.shape_cast %85 : vector<8x128xf32> to vector<1x8x128xf32>
      %cst_42 = arith.constant dense<0.000000e+00> : vector<1xf32>
      %87 = vector.multi_reduction <add>, %86, %cst_42 [1, 2] : vector<1x8x128xf32> to vector<1xf32>
      %88 = vector.shape_cast %87 : vector<1xf32> to vector<1x1x1xf32>
      %89 = vector.extract %88[0, 0, 0] : f32 from vector<1x1x1xf32>
      %90 = vector.broadcast %89 : f32 to vector<1x1xf32>
      %c0_43 = arith.constant 0 : index
      %c0_44 = arith.constant 0 : index
      %91 = vector.load %arg5[%c0_43, %c0_44] : memref<1x1xf32, #tpu.memory_space<vmem>>, vector<1x1xf32>
      tpu.vector_store %arg5[%c0_43, %c0_44], %90 {strides = array<i32>} : memref<1x1xf32, #tpu.memory_space<vmem>>, vector<1x1xf32>,
      %c0_45 = arith.constant 0 : index
      %c0_46 = arith.constant 0 : index
      %92 = vector.load %arg9[%c0_45, %c0_46] : memref<8x128xf32, #tpu.memory_space<vmem>>, vector<8x128xf32>
      %93 = vector.shape_cast %92 : vector<8x128xf32> to vector<1x8x128xf32>
      %cst_47 = arith.constant dense<0.000000e+00> : vector<1xf32>
      %94 = vector.multi_reduction <add>, %93, %cst_47 [1, 2] : vector<1x8x128xf32> to vector<1xf32>
      %95 = vector.shape_cast %94 : vector<1xf32> to vector<1x1x1xf32>
      %96 = vector.extract %95[0, 0, 0] : f32 from vector<1x1x1xf32>
      %97 = vector.broadcast %96 : f32 to vector<1x1xf32>
      %c0_48 = arith.constant 0 : index
      %c0_49 = arith.constant 0 : index
      %98 = vector.load %arg6[%c0_48, %c0_49] : memref<1x1xf32, #tpu.memory_space<vmem>>, vector<1x1xf32>
      tpu.vector_store %arg6[%c0_48, %c0_49], %97 {strides = array<i32>} : memref<1x1xf32, #tpu.memory_space<vmem>>, vector<1x1xf32>,
      %c0_50 = arith.constant 0 : index
      %c0_51 = arith.constant 0 : index
      %99 = vector.load %arg10[%c0_50, %c0_51] : memref<8x128xf32, #tpu.memory_space<vmem>>, vector<8x128xf32>
      %100 = vector.shape_cast %99 : vector<8x128xf32> to vector<1x8x128xf32>
      %cst_52 = arith.constant dense<0.000000e+00> : vector<1xf32>
      %101 = vector.multi_reduction <add>, %100, %cst_52 [1, 2] : vector<1x8x128xf32> to vector<1xf32>
      %102 = vector.shape_cast %101 : vector<1xf32> to vector<1x1x1xf32>
      %103 = vector.extract %102[0, 0, 0] : f32 from vector<1x1x1xf32>
      %104 = vector.broadcast %103 : f32 to vector<1x1xf32>
      %c0_53 = arith.constant 0 : index
      %c0_54 = arith.constant 0 : index
      %105 = vector.load %arg7[%c0_53, %c0_54] : memref<1x1xf32, #tpu.memory_space<vmem>>, vector<1x1xf32>
      tpu.vector_store %arg7[%c0_53, %c0_54], %104 {strides = array<i32>} : memref<1x1xf32, #tpu.memory_space<vmem>>, vector<1x1xf32>,
    } else {
    }
    return
  }
  func.func @transform_0(%arg0: i32) -> (i32, i32) {
    %c0_i32 = arith.constant 0 : i32
    %0 = arith.minsi %arg0, %c0_i32 : i32
    %c0_i32_0 = arith.constant 0 : i32
    %c0_i32_1 = arith.constant 0 : i32
    return %0, %c0_i32_0 : i32, i32
  }
  func.func @transform_1(%arg0: i32) -> (i32, i32) {
    %c0_i32 = arith.constant 0 : i32
    %0 = arith.minsi %arg0, %c0_i32 : i32
    %c0_i32_0 = arith.constant 0 : i32
    %c0_i32_1 = arith.constant 0 : i32
    return %0, %c0_i32_0 : i32, i32
  }
  func.func @transform_2(%arg0: i32) -> (i32, i32) {
    %c0_i32 = arith.constant 0 : i32
    %0 = arith.minsi %arg0, %c0_i32 : i32
    %c0_i32_0 = arith.constant 0 : i32
    %c0_i32_1 = arith.constant 0 : i32
    return %0, %c0_i32_0 : i32, i32
  }
  func.func @transform_3(%arg0: i32) -> (i32, i32) {
    %c0_i32 = arith.constant 0 : i32
    %0 = arith.minsi %arg0, %c0_i32 : i32
    %c0_i32_0 = arith.constant 0 : i32
    %c0_i32_1 = arith.constant 0 : i32
    return %0, %c0_i32_0 : i32, i32
  }
  func.func @transform_4(%arg0: i32) -> (i32, i32) {
    %c0_i32 = arith.constant 0 : i32
    %c0_i32_0 = arith.constant 0 : i32
    %c0_i32_1 = arith.constant 0 : i32
    return %c0_i32, %c0_i32_0 : i32, i32
  }
  func.func @transform_5(%arg0: i32) -> (i32, i32) {
    %c0_i32 = arith.constant 0 : i32
    %c0_i32_0 = arith.constant 0 : i32
    %c0_i32_1 = arith.constant 0 : i32
    return %c0_i32, %c0_i32_0 : i32, i32
  }
  func.func @transform_6(%arg0: i32) -> (i32, i32) {
    %c0_i32 = arith.constant 0 : i32
    %c0_i32_0 = arith.constant 0 : i32
    %c0_i32_1 = arith.constant 0 : i32
    return %c0_i32, %c0_i32_0 : i32, i32
  }
}

</mosaic_0001>

<llo_original>
// kernel: tpu_custom_call.1
$region0: #{tpu_custom_call.1}
  #allocation0 [shape = 'u32[]', space=smem, size = 0x4, offset = 0x4, fixed_abs, tag = 'smem constant byte address 0x4 - core index']
  #allocation1 [shape = 'u32[72,128]{1,0:T(1,128)}', space=vmem, size = 0x9000, scoped, tag = 'internal scratch']
  #allocation2 [shape = 'f32[8,128]{1,0:T(8,128)}', space=vmem, size = 0x1000, scoped, tag = 'scratch operand']
  #allocation3 [shape = 'f32[8,128]{1,0:T(8,128)}', space=vmem, size = 0x1000, scoped, tag = 'scratch operand']
  #allocation4 [shape = 'f32[8,128]{1,0:T(8,128)}', space=vmem, size = 0x1000, scoped, tag = 'scratch operand']
  %s0 = inlined_call_operand.hbm [shape: f32[16,128], index: 0, kind: input, shape index: {}]
  %s1 = inlined_call_operand.hbm [shape: f32[16,128], index: 1, kind: input, shape index: {}]
  %s2 = inlined_call_operand.hbm [shape: f32[8,128], index: 2, kind: input, shape index: {}]
  %s3 = inlined_call_operand.hbm [shape: f32[8,128], index: 3, kind: input, shape index: {}]
  %s4 = inlined_call_operand.hbm [shape: f32[1,1], index: 4, kind: output, shape index: {0}]
  %s5 = inlined_call_operand.hbm [shape: f32[1,1], index: 5, kind: output, shape index: {1}]
  %s6 = inlined_call_operand.hbm [shape: f32[1,1], index: 6, kind: output, shape index: {2}]
  %7 = xla_tuple %s4, %s5, %s6
  %s8 = sld [smem:[#allocation0]]
  $region66: #{tpu_custom_call.1} parent=0
    _
  %s10 = ssub.s32 1, %s8
  %s11 = scalar_select 0, %s10, %s8
  $region1: #{tpu_custom_call.1} parent=0
    #allocation5 [shape = 'u8[8192]{0}', space=vmem, size = 0x2000, scoped, tag = 'input window, operand 0, single buffered']
    #allocation6 [shape = 's32[1]{0}', space=sflag, size = 0x4, scoped, tag = 'scoped memory for tpu_custom_call.1']
    #allocation7 [shape = 's32[1]{0}', space=sflag, size = 0x4, scoped, tag = 'scoped memory for tpu_custom_call.1']
    #allocation8 [shape = 'u8[8192]{0}', space=vmem, size = 0x2000, scoped, tag = 'input window, operand 1, single buffered']
    #allocation9 [shape = 's32[1]{0}', space=sflag, size = 0x4, scoped, tag = 'scoped memory for tpu_custom_call.1']
    #allocation10 [shape = 'u8[4096]{0}', space=vmem, size = 0x1000, scoped, tag = 'input window, operand 2, single buffered']
    #allocation11 [shape = 'u8[4096]{0}', space=vmem, size = 0x1000, scoped, tag = 'input window, operand 3, single buffered']
    #allocation12 [shape = 's32[1]{0}', space=sflag, size = 0x4, scoped, tag = 'scoped memory for tpu_custom_call.1']
    #allocation13 [shape = 'u8[512]{0}', space=vmem, size = 0x400, scoped, tag = 'output window, operand 0, single buffered']
    #allocation14 [shape = 'u8[512]{0}', space=vmem, size = 0x400, scoped, tag = 'output window, operand 1, single buffered']
    #allocation15 [shape = 's32[1]{0}', space=sflag, size = 0x4, scoped, tag = 'scoped memory for tpu_custom_call.1']
    #allocation16 [shape = 'u8[512]{0}', space=vmem, size = 0x400, scoped, tag = 'output window, operand 2, single buffered']
    %12 = vsyncpa [#allocation6], 0
    %13 = vsyncpa [#allocation9], 0
    %14 = vsyncpa [#allocation12], 0
    %15 = vsyncpa [#allocation7], 0
    %16 = vsyncpa [#allocation15], 0
    // Predicated region
    $region2: #{tpu_custom_call.1} parent=1 // pred_check
      _
    $region3: #{tpu_custom_call.1} parent=1 // pred_check_branch
      %18 = sbr.rel (0) target = $region5
    $region4: #{tpu_custom_call.1} parent=1 // pred_region
      %20 = vsyncadd [#allocation6], 0
      %s21 = sshll.u32 %s0, 4
      %s22 = int_to_ptr.hbm [resolvable:$true] %s21
      %s23 = sshll.u32 [#allocation5], 4
      %s24 = int_to_ptr.vmem [resolvable:$true] %s23
      %29 = dma.hbm_to_vmem [thread:$0]  %s22, 256, %s24, [#allocation6], 128, 128, 8
    $region5: #{tpu_custom_call.1} parent=1 // pred_fallthru
      _
    // Predicated region
    $region6: #{tpu_custom_call.1} parent=1 // pred_check
      _
    $region7: #{tpu_custom_call.1} parent=1 // pred_check_branch
      %31 = sbr.rel (0) target = $region9
    $region8: #{tpu_custom_call.1} parent=1 // pred_region
      %33 = vsyncadd [#allocation9], 0
      %s34 = sshll.u32 %s1, 4
      %s35 = int_to_ptr.hbm [resolvable:$true] %s34
      %s36 = sshll.u32 [#allocation8], 4
      %s37 = int_to_ptr.vmem [resolvable:$true] %s36
      %42 = dma.hbm_to_vmem [thread:$0]  %s35, 256, %s37, [#allocation9], 128, 128, 8
    $region9: #{tpu_custom_call.1} parent=1 // pred_fallthru
      _
    // Predicated region
    $region10: #{tpu_custom_call.1} parent=1 // pred_check
      _
    $region11: #{tpu_custom_call.1} parent=1 // pred_check_branch
      %44 = sbr.rel (0) target = $region13
    $region12: #{tpu_custom_call.1} parent=1 // pred_region
      %46 = vsyncadd [#allocation9], 0
      %s48 = sshll.u32 %s2, 4
      %s49 = int_to_ptr.hbm [resolvable:$true] %s48
      %s50 = sshll.u32 [#allocation10], 4
      %s51 = int_to_ptr.vmem [resolvable:$true] %s50
      %53 = dma.hbm_to_vmem [thread:$0]  %s49, 128, %s51, [#allocation9]
    $region13: #{tpu_custom_call.1} parent=1 // pred_fallthru
      _
    // Predicated region
    $region14: #{tpu_custom_call.1} parent=1 // pred_check
      _
    $region15: #{tpu_custom_call.1} parent=1 // pred_check_branch
      %55 = sbr.rel (0) target = $region17
    $region16: #{tpu_custom_call.1} parent=1 // pred_region
      %57 = vsyncadd [#allocation12], 0
      %s59 = sshll.u32 %s3, 4
      %s60 = int_to_ptr.hbm [resolvable:$true] %s59
      %s61 = sshll.u32 [#allocation11], 4
      %s62 = int_to_ptr.vmem [resolvable:$true] %s61
      %64 = dma.hbm_to_vmem [thread:$0]  %s60, 128, %s62, [#allocation12]
    $region17: #{tpu_custom_call.1} parent=1 // pred_fallthru
      _
    // Predicated region
    $region18: #{tpu_custom_call.1} parent=1 // pred_check
      _
    $region19: #{tpu_custom_call.1} parent=1 // pred_check_branch
      %66 = sbr.rel (0) target = $region21
    $region20: #{tpu_custom_call.1} parent=1 // pred_region
      %68 = dma.done [#allocation6], 256
    $region21: #{tpu_custom_call.1} parent=1 // pred_fallthru
      _
    // Predicated region
    $region22: #{tpu_custom_call.1} parent=1 // pred_check
      _
    $region23: #{tpu_custom_call.1} parent=1 // pred_check_branch
      %70 = sbr.rel (0) target = $region25
    $region24: #{tpu_custom_call.1} parent=1 // pred_region
      %72 = dma.done [#allocation9], 256
    $region25: #{tpu_custom_call.1} parent=1 // pred_fallthru
      _
    // Predicated region
    $region26: #{tpu_custom_call.1} parent=1 // pred_check
      _
    $region27: #{tpu_custom_call.1} parent=1 // pred_check_branch
      %74 = sbr.rel (0) target = $region29
    $region28: #{tpu_custom_call.1} parent=1 // pred_region
      %76 = dma.done [#allocation9], 128
    $region29: #{tpu_custom_call.1} parent=1 // pred_fallthru
      _
    // Predicated region
    $region30: #{tpu_custom_call.1} parent=1 // pred_check
      _
    $region31: #{tpu_custom_call.1} parent=1 // pred_check_branch
      %78 = sbr.rel (0) target = $region33
    $region32: #{tpu_custom_call.1} parent=1 // pred_region
      %80 = dma.done [#allocation12], 128
    $region33: #{tpu_custom_call.1} parent=1 // pred_fallthru
      _
    %p81 = scmp.eq.s32.totalorder 0, 0
    // Predicated region
    $region34: #{tpu_custom_call.1} parent=1 // pred_check
      %p82 = pneg %p81
    $region35: #{tpu_custom_call.1} parent=1 // pred_check_branch
      %84 = sbr.rel (%p82) target = $region37
    $region36: #{tpu_custom_call.1} parent=1 // pred_region
      %85 = vst [vmem:[#allocation2] sm:$0xff] 0.0
      %86 = vst [vmem:[#allocation3] sm:$0xff] 0.0
      %87 = vst [vmem:[#allocation4] sm:$0xff] 0.0
    $region37: #{tpu_custom_call.1} parent=1 // pred_fallthru
      _
    %s88 = smul.u32 0, 2048
    %v89 = vlaneseq
    %v90 = vshrl.u32 %v89, 7
    %v91 = vadd.s32 %v90, 8
    %v92 = vlaneseq
    %v93 = vand.u32 %v92, 127
    %v94 = vmul.u32 %v90, 128
    %v95 = vmul.u32 %v91, 128
    %v96 = vstv %s88
    %v97 = vadd.s32 %v96, %v94
    %v98 = vadd.s32 %v96, %v95
    %v99 = vadd.s32 %v97, %v93
    %v100 = vadd.s32 %v98, %v93
    %vm101 = vcmp.lt.s32.totalorder %v99, 2048
    %vm102 = vcmp.lt.s32.totalorder %v100, 2048
    %p103 = scmp.lt.s32.totalorder 0, 1
    %s104 = scalar_select %p103, 1, 0
    %v105 = vstv %s104
    %vm106 = vcmp.eq.s32.totalorder %v105, 1
    %vm107 = vmand %vm101, %vm106
    %vm108 = vmand %vm102, %vm106
    %v109 = vld [vmem:[#allocation8] sm:$0xff]
    %v110 = vld [vmem:[#allocation8 + $0x8] sm:$0xff]
    %v111 = vld [vmem:[#allocation5] sm:$0xff]
    %v112 = vld [vmem:[#allocation5 + $0x8] sm:$0xff]
    %v113 = vsub.f32 %v109, %v111
    %v114 = vsub.f32 %v110, %v112
    %v115 = vmul.f32 %v113, %v113
    %v116 = vmul.f32 %v114, %v114
    %v117 = vsel %vm107, %v115, 0.0
    %v118 = vsel %vm108, %v116, 0.0
    %v119 = vld [vmem:[#allocation2] sm:$0xff]
    %v120 = vadd.f32 %v117, %v118
    %v121 = vadd.f32 %v119, %v120
    %122 = vst [vmem:[#allocation2] sm:$0xff] %v121
    %s123 = smul.u32 0, 1024
    %v124 = vstv %s123
    %v125 = vadd.s32 %v124, %v94
    %v126 = vadd.s32 %v125, %v93
    %vm127 = vcmp.lt.s32.totalorder %v126, 256
    %vm128 = vmand %vm127, %vm106
    %v129 = vld [vmem:[#allocation10] sm:$0xff]
    %v130 = vlog2.pop %v129
    %v131 = vmul.f32 %v130, 0.6931472
    %v132 = vsub.f32 0.0, %v131
    %v133 = vmul.f32 %v132, 1.442695
    %v134 = vsel %vm128, %v133, 0.0
    %v135 = vld [vmem:[#allocation3] sm:$0xff]
    %v136 = vadd.f32 %v134, 0.0
    %v137 = vadd.f32 %v135, %v136
    %138 = vst [vmem:[#allocation3] sm:$0xff] %v137
    %vm139 = vcmp.lt.s32.totalorder %v126, 64
    %vm140 = vmand %vm139, %vm106
    %v141 = vld [vmem:[#allocation11] sm:$0xff]
    %v142 = vlog2.pop %v141
    %v143 = vmul.f32 %v142, 0.6931472
    %v144 = vsub.f32 0.0, %v143
    %v145 = vmul.f32 %v144, 1.442695
    %v146 = vsel %vm140, %v145, 0.0
    %v147 = vld [vmem:[#allocation4] sm:$0xff]
    %v148 = vadd.f32 %v146, 0.0
    %v149 = vadd.f32 %v147, %v148
    %150 = vst [vmem:[#allocation4] sm:$0xff] %v149
    // Predicated region
    $region38: #{tpu_custom_call.1} parent=1 // pred_check
      %p151 = pneg %p81
    $region39: #{tpu_custom_call.1} parent=1 // pred_check_branch
      %153 = sbr.rel (%p151) target = $region41
    $region40: #{tpu_custom_call.1} parent=1 // pred_region
      %v154 = vld [vmem:[#allocation2] sm:$0xff]
      %155 = vadd.xlane.f32.xlu0 %v154
      %v156 = vpop.xlane.xlu0 %155
      %v157 = vrot.slane %v156, 4
      %v158 = vadd.f32 %v156, %v157
      %v159 = vrot.slane %v158, 2
      %v160 = vadd.f32 %v158, %v159
      %v161 = vrot.slane %v160, 1
      %v162 = vadd.f32 %v160, %v161
      %s163 = vtos %v162
      %v164 = vstv %s163
      %vm165 = vcmask 0
      %166 = vst.msk [vmem:[#allocation13] sm:$0x1] %vm165, %v164
      %v167 = vld [vmem:[#allocation3] sm:$0xff]
      %168 = vadd.xlane.f32.xlu0 %v167
      %v169 = vpop.xlane.xlu0 %168
      %v170 = vrot.slane %v169, 4
      %v171 = vadd.f32 %v169, %v170
      %v172 = vrot.slane %v171, 2
      %v173 = vadd.f32 %v171, %v172
      %v174 = vrot.slane %v173, 1
      %v175 = vadd.f32 %v173, %v174
      %s176 = vtos %v175
      %v177 = vstv %s176
      %178 = vst.msk [vmem:[#allocation14] sm:$0x1] %vm165, %v177
      %v179 = vld [vmem:[#allocation4] sm:$0xff]
      %180 = vadd.xlane.f32.xlu0 %v179
      %v181 = vpop.xlane.xlu0 %180
      %v182 = vrot.slane %v181, 4
      %v183 = vadd.f32 %v181, %v182
      %v184 = vrot.slane %v183, 2
      %v185 = vadd.f32 %v183, %v184
      %v186 = vrot.slane %v185, 1
      %v187 = vadd.f32 %v185, %v186
      %s188 = vtos %v187
      %v189 = vstv %s188
      %190 = vst.msk [vmem:[#allocation16] sm:$0x1] %vm165, %v189
    $region41: #{tpu_custom_call.1} parent=1 // pred_fallthru
      _
    // Predicated region
    $region42: #{tpu_custom_call.1} parent=1 // pred_check
      _
    $region43: #{tpu_custom_call.1} parent=1 // pred_check_branch
      %192 = sbr.rel (0) target = $region45
    $region44: #{tpu_custom_call.1} parent=1 // pred_region
      %194 = vsyncadd [#allocation7], 0
      %s196 = sshll.u32 [#allocation13], 4
      %s197 = int_to_ptr.vmem [resolvable:$true] %s196
      %s198 = sshll.u32 %s4, 4
      %s199 = int_to_ptr.hbm [resolvable:$true] %s198
      %201 = dma.vmem_to_hbm [thread:$0]  %s197, 16, %s199, [#allocation7]
    $region45: #{tpu_custom_call.1} parent=1 // pred_fallthru
      _
    // Predicated region
    $region46: #{tpu_custom_call.1} parent=1 // pred_check
      _
    $region47: #{tpu_custom_call.1} parent=1 // pred_check_branch
      %203 = sbr.rel (0) target = $region49
    $region48: #{tpu_custom_call.1} parent=1 // pred_region
      %205 = vsyncadd [#allocation15], 0
      %s207 = sshll.u32 [#allocation14], 4
      %s208 = int_to_ptr.vmem [resolvable:$true] %s207
      %s209 = sshll.u32 %s5, 4
      %s210 = int_to_ptr.hbm [resolvable:$true] %s209
      %212 = dma.vmem_to_hbm [thread:$0]  %s208, 16, %s210, [#allocation15]
    $region49: #{tpu_custom_call.1} parent=1 // pred_fallthru
      _
    // Predicated region
    $region50: #{tpu_custom_call.1} parent=1 // pred_check
      _
    $region51: #{tpu_custom_call.1} parent=1 // pred_check_branch
      %214 = sbr.rel (0) target = $region53
    $region52: #{tpu_custom_call.1} parent=1 // pred_region
      %216 = vsyncadd [#allocation15], 0
      %s218 = sshll.u32 [#allocation16], 4
      %s219 = int_to_ptr.vmem [resolvable:$true] %s218
      %s220 = sshll.u32 %s6, 4
      %s221 = int_to_ptr.hbm [resolvable:$true] %s220
      %223 = dma.vmem_to_hbm [thread:$0]  %s219, 16, %s221, [#allocation15]
    $region53: #{tpu_custom_call.1} parent=1 // pred_fallthru
      _
    // Predicated region
    $region54: #{tpu_custom_call.1} parent=1 // pred_check
      _
    $region55: #{tpu_custom_call.1} parent=1 // pred_check_branch
      %225 = sbr.rel (0) target = $region57
    $region56: #{tpu_custom_call.1} parent=1 // pred_region
      %227 = dma.done [#allocation7], 16
    $region57: #{tpu_custom_call.1} parent=1 // pred_fallthru
      _
    // Predicated region
    $region58: #{tpu_custom_call.1} parent=1 // pred_check
      _
    $region59: #{tpu_custom_call.1} parent=1 // pred_check_branch
      %229 = sbr.rel (0) target = $region61
    $region60: #{tpu_custom_call.1} parent=1 // pred_region
      %231 = dma.done [#allocation15], 16
    $region61: #{tpu_custom_call.1} parent=1 // pred_fallthru
      _
    // Predicated region
    $region62: #{tpu_custom_call.1} parent=1 // pred_check
      _
    $region63: #{tpu_custom_call.1} parent=1 // pred_check_branch
      %233 = sbr.rel (0) target = $region65
    $region64: #{tpu_custom_call.1} parent=1 // pred_region
      %235 = dma.done [#allocation15], 16
    $region65: #{tpu_custom_call.1} parent=1 // pred_fallthru
      _
    %236 = vsyncpa [#allocation6], 1
    %237 = vsyncpa [#allocation9], 1
    %238 = vsyncpa [#allocation12], 1
    %239 = vsyncpa [#allocation7], 1
    %240 = vsyncpa [#allocation15], 1

</llo_original>
